<compile_context>
chip_gen: v5e
topology: v5e:2x2
jax: 0.10.0
libtpu: 0.0.40
codegen_flags: <defaults>
</compile_context>

<pallas_src>
import functools

import jax
import jax.numpy as jnp
from jax import lax
from jax.experimental import pallas as pl
from jax.experimental.pallas import tpu as pltpu


def _conv1d_fused_kernel(x_ref, w_ref, o_ref, xcat_ref, *, K, C, TL, dilation,
                         single_tile):
    # x_ref:    (1, C, L_x)   full (padded) length, resident per batch
    # w_ref:    (C_out, K*C)  flattened weights (tap-major, channel-minor)
    # o_ref:    (1, C_out, TL) current output tile
    # xcat_ref: (K*C, TL)     VMEM scratch holding the im2col slab for this tile
    if single_tile:
        start = 0
    else:
        start = pl.multiple_of(pl.program_id(1) * TL, 128)
    # Small static loop: K shifted lane-slices -> one contiguous contraction slab.
    for k in range(K):
        xcat_ref[pl.ds(k * C, C), :] = x_ref[0, :, pl.ds(start + k * dilation, TL)]
    # Single fused MXU matmul per tile (contraction dim = K*C instead of C).
    o_ref[0] = jnp.dot(
        w_ref[...], xcat_ref[...], preferred_element_type=jnp.float32
    ).astype(o_ref.dtype)


def _conv1d_k1_kernel(x_ref, w_ref, o_ref, *, TL, single_tile):
    # Degenerate K==1 case (kernel_size==1, or stride>1 after the wrapper's
    # phase im2col): plain (C_out, C) x (C, TL) matmul, no scratch needed.
    if single_tile:
        start = 0
    else:
        start = pl.multiple_of(pl.program_id(1) * TL, 128)
    o_ref[0] = jnp.dot(
        w_ref[...], x_ref[0, :, pl.ds(start, TL)],
        preferred_element_type=jnp.float32,
    ).astype(o_ref.dtype)


def conv1d_pallas(x, w, *, stride=1, padding=0, dilation=1, groups=1):
    """Forward pass of Classic (nn.Conv1d, bias=False, padding_mode='zeros')."""
    if groups != 1:
        # TODO(synk): grouped conv not implemented (module default groups=1).
        raise NotImplementedError("groups != 1 not supported")
    N, C_in, L = x.shape
    C_out, C_in_w, K = w.shape
    assert C_in_w == C_in

    L_p = L + 2 * padding
    L_out = (L_p - dilation * (K - 1) - 1) // stride + 1
    assert L_out > 0

    # Flattened weights: W2[o, k*C_in + c] = w[o, c, k] -> single fused contraction.
    w2 = jnp.transpose(w, (0, 2, 1)).reshape(C_out, K * C_in)

    if stride == 1:
        x_k = x
        C_eff, K_eff, dil_eff = C_in, K, dilation
        pad_left = padding
    else:
        # TODO(synk): stride>1 is lowered via a wrapper-side phase im2col (one extra
        # HBM copy of the downsampled input) so the kernel only does contiguous
        # lane reads; could be moved in-kernel with a phase-decomposed layout.
        x_p = jnp.pad(x, ((0, 0), (0, 0), (padding, padding))) if padding > 0 else x
        taps = [
            lax.slice(
                x_p,
                (0, 0, k * dilation),
                (N, C_in, k * dilation + (L_out - 1) * stride + 1),
                (1, 1, stride),
            )
            for k in range(K)
        ]
        x_k = jnp.concatenate(taps, axis=1)  # (N, K*C_in, L_out), tap-major rows
        C_eff, K_eff, dil_eff = K * C_in, 1, 1
        pad_left = 0

    # Length tiling: lane-dense 512-wide tiles for large outputs, otherwise a
    # single full-extent tile (block shape == full dim is always legal).
    TL = 512 if L_out > 1024 else L_out
    T = pl.cdiv(L_out, TL)
    # Right-pad so every tile's input window [t*TL, t*TL + TL + dil*(K-1)) is
    # in bounds (folds the conv zero padding and tile rounding into one pad).
    L_need = T * TL + dil_eff * (K_eff - 1)
    pad_right = L_need - x_k.shape[2] - pad_left
    assert pad_right >= 0
    if pad_left > 0 or pad_right > 0:
        x_k = jnp.pad(x_k, ((0, 0), (0, 0), (pad_left, pad_right)))
    L_x = x_k.shape[2]

    single_tile = (T == 1)
    if K_eff > 1:
        kernel = functools.partial(
            _conv1d_fused_kernel, K=K_eff, C=C_eff, TL=TL, dilation=dil_eff,
            single_tile=single_tile)
        scratch_shapes = [pltpu.VMEM((K_eff * C_eff, TL), x_k.dtype)]
    else:
        kernel = functools.partial(_conv1d_k1_kernel, TL=TL, single_tile=single_tile)
        scratch_shapes = []

    itemsize = jnp.dtype(x.dtype).itemsize
    cost = pl.CostEstimate(
        flops=2 * N * C_out * C_in * K * L_out,
        transcendentals=0,
        bytes_accessed=int(x_k.size) * itemsize
        + int(w2.size) * itemsize
        + N * C_out * L_out * itemsize,
    )

    return pl.pallas_call(
        kernel,
        out_shape=jax.ShapeDtypeStruct((N, C_out, L_out), x.dtype),
        grid_spec=pltpu.PrefetchScalarGridSpec(
            num_scalar_prefetch=0,
            grid=(N, T),
            in_specs=[
                # Input block: full (padded) length, fetched once per batch and
                # kept resident while its T length-tiles are produced.
                pl.BlockSpec((1, C_eff, L_x), lambda n, t: (n, 0, 0)),
                # Flattened weights: constant block, resident for the whole grid.
                pl.BlockSpec((C_out, K_eff * C_eff), lambda n, t: (0, 0)),
            ],
            out_specs=pl.BlockSpec((1, C_out, TL), lambda n, t: (n, 0, t)),
            scratch_shapes=scratch_shapes,
        ),
        compiler_params=pltpu.CompilerParams(
            dimension_semantics=("parallel", "parallel")
        ),
        cost_estimate=cost,
    )(x_k, w2)


def _reference_conv1d(x, w, stride, padding, dilation):
    return lax.conv_general_dilated(
        x, w,
        window_strides=(stride,),
        padding=[(padding, padding)],
        rhs_dilation=(dilation,),
        dimension_numbers=("NCH", "OIH", "NCH"),
        precision=lax.Precision.HIGHEST,
    )


if __name__ == "__main__":
    key = jax.random.PRNGKey(0)
    keys = jax.random.split(key, 6)

    def run_check(kx, kw, *, N, C_in, C_out, K, L, stride=1, padding=0, dilation=1):
        x = jax.random.normal(kx, (N, C_in, L), dtype=jnp.float32)
        bound = 1.0 / (C_in * K) ** 0.5  # nn.Conv1d default init range
        w = jax.random.uniform(kw, (C_out, C_in, K), minval=-bound, maxval=bound,
                               dtype=jnp.float32)
        y = conv1d_pallas(x, w, stride=stride, padding=padding, dilation=dilation)
        y = jax.block_until_ready(y)
        y_ref = _reference_conv1d(x, w, stride, padding, dilation)
        assert y.shape == y_ref.shape, (y.shape, y_ref.shape)
        err = float(jnp.max(jnp.abs(y - y_ref)))
        assert err < 1e-3, err
        return y

    # Primary small config: Classic(4, 8, 3) with module defaults
    # (stride=1, padding=0, dilation=1, groups=1, bias=False) on x:(2, 4, 16).
    run_check(keys[0], keys[1], N=2, C_in=4, C_out=8, K=3, L=16)
    # Exercise the L-tiled path (TL=512, partial last tile) with padding + dilation.
    run_check(keys[2], keys[3], N=2, C_in=8, C_out=16, K=3, L=1500,
              padding=2, dilation=2)
    # Exercise the stride>1 path (wrapper phase-im2col -> K_eff=1 kernel).
    run_check(keys[4], keys[5], N=2, C_in=4, C_out=8, K=3, L=33,
              stride=2, padding=1)

    print("KERNEL_OK")
</pallas_src>

<mosaic_0001>
module attributes {stable_mosaic.version = 11 : i64} {
  func.func @_conv1d_fused_kernel(%arg0: i32, %arg1: i32, %arg2: memref<1x4x16xf32, #tpu.memory_space<vmem>>, %arg3: memref<8x12xf32, #tpu.memory_space<vmem>>, %arg4: memref<1x8x14xf32, #tpu.memory_space<vmem>>, %arg5: memref<12x14xf32, #tpu.memory_space<vmem>>) attributes {dimension_semantics = [#tpu.dimension_semantics<parallel>, #tpu.dimension_semantics<parallel>], iteration_bounds = array<i64: 2, 1>, scalar_prefetch = 0 : i64, scratch_operands = 1 : i64, tpu.core_type = #tpu.core_type<tc>, window_params = [{transform_indices = @transform_0, window_bounds = array<i64: 1, 4, 16>}, {pipeline_mode = #tpu.pipeline_mode<synchronous>, transform_indices = @transform_1, window_bounds = array<i64: 8, 12>}, {transform_indices = @transform_2, window_bounds = array<i64: 1, 8, 14>}]} {
    %c0 = arith.constant 0 : index
    %c0_0 = arith.constant 0 : index
    %c0_1 = arith.constant 0 : index
    %0 = vector.load %arg2[%c0, %c0_0, %c0_1] : memref<1x4x16xf32, #tpu.memory_space<vmem>>, vector<1x4x14xf32>
    %1 = vector.shape_cast %0 : vector<1x4x14xf32> to vector<4x14xf32>
    %c0_2 = arith.constant 0 : index
    %c0_3 = arith.constant 0 : index
    %2 = vector.load %arg5[%c0_2, %c0_3] : memref<12x14xf32, #tpu.memory_space<vmem>>, vector<4x14xf32>
    tpu.vector_store %arg5[%c0_2, %c0_3], %1 {strides = array<i32>} : memref<12x14xf32, #tpu.memory_space<vmem>>, vector<4x14xf32>,
    %c0_4 = arith.constant 0 : index
    %c0_5 = arith.constant 0 : index
    %c1 = arith.constant 1 : index
    %3 = vector.load %arg2[%c0_4, %c0_5, %c1] : memref<1x4x16xf32, #tpu.memory_space<vmem>>, vector<1x4x14xf32>
    %4 = vector.shape_cast %3 : vector<1x4x14xf32> to vector<4x14xf32>
    %c4 = arith.constant 4 : index
    %c0_6 = arith.constant 0 : index
    %5 = vector.load %arg5[%c4, %c0_6] : memref<12x14xf32, #tpu.memory_space<vmem>>, vector<4x14xf32>
    tpu.vector_store %arg5[%c4, %c0_6], %4 {strides = array<i32>} : memref<12x14xf32, #tpu.memory_space<vmem>>, vector<4x14xf32>,
    %c0_7 = arith.constant 0 : index
    %c0_8 = arith.constant 0 : index
    %c2 = arith.constant 2 : index
    %6 = vector.load %arg2[%c0_7, %c0_8, %c2] : memref<1x4x16xf32, #tpu.memory_space<vmem>>, vector<1x4x14xf32>
    %7 = vector.shape_cast %6 : vector<1x4x14xf32> to vector<4x14xf32>
    %c8 = arith.constant 8 : index
    %c0_9 = arith.constant 0 : index
    %8 = vector.load %arg5[%c8, %c0_9] : memref<12x14xf32, #tpu.memory_space<vmem>>, vector<4x14xf32>
    tpu.vector_store %arg5[%c8, %c0_9], %7 {strides = array<i32>} : memref<12x14xf32, #tpu.memory_space<vmem>>, vector<4x14xf32>,
    %c0_10 = arith.constant 0 : index
    %c0_11 = arith.constant 0 : index
    %9 = vector.load %arg3[%c0_10, %c0_11] : memref<8x12xf32, #tpu.memory_space<vmem>>, vector<8x12xf32>
    %c0_12 = arith.constant 0 : index
    %c0_13 = arith.constant 0 : index
    %10 = vector.load %arg5[%c0_12, %c0_13] : memref<12x14xf32, #tpu.memory_space<vmem>>, vector<12x14xf32>
    %cst = arith.constant dense<0.000000e+00> : vector<8x14xf32>
    %11 = tpu.matmul %9, %10, %cst {dimension_numbers = #tpu.dot_dimension_numbers<[1], [0], [0], [1], [0, 0, 1, 1], [], []>} : vector<8x12xf32>, vector<12x14xf32>, vector<8x14xf32> -> vector<8x14xf32>
    %c0_14 = arith.constant 0 : index
    %c0_15 = arith.constant 0 : index
    %c0_16 = arith.constant 0 : index
    %12 = vector.load %arg4[%c0_14, %c0_15, %c0_16] : memref<1x8x14xf32, #tpu.memory_space<vmem>>, vector<1x8x14xf32>
    %13 = vector.shape_cast %12 : vector<1x8x14xf32> to vector<8x14xf32>
    %14 = vector.shape_cast %11 : vector<8x14xf32> to vector<1x8x14xf32>
    tpu.vector_store %arg4[%c0_14, %c0_15, %c0_16], %14 {strides = array<i32>} : memref<1x8x14xf32, #tpu.memory_space<vmem>>, vector<1x8x14xf32>,
    return
  }
  func.func @transform_0(%arg0: i32, %arg1: i32) -> (i32, i32, i32) {
    %c0_i32 = arith.constant 0 : i32
    %c0_i32_0 = arith.constant 0 : i32
    %c0_i32_1 = arith.constant 0 : i32
    return %arg0, %c0_i32, %c0_i32_0 : i32, i32, i32
  }
  func.func @transform_1(%arg0: i32, %arg1: i32) -> (i32, i32) {
    %c0_i32 = arith.constant 0 : i32
    %c0_i32_0 = arith.constant 0 : i32
    %c0_i32_1 = arith.constant 0 : i32
    return %c0_i32, %c0_i32_0 : i32, i32
  }
  func.func @transform_2(%arg0: i32, %arg1: i32) -> (i32, i32, i32) {
    %c0_i32 = arith.constant 0 : i32
    %c0_i32_0 = arith.constant 0 : i32
    return %arg0, %c0_i32, %arg1 : i32, i32, i32
  }
}

</mosaic_0001>

<llo_original>
// kernel: tpu_custom_call.1
$region0: #{tpu_custom_call.1}
  #allocation0 [shape = 'u32[]', space=smem, size = 0x4, offset = 0x4, fixed_abs, tag = 'smem constant byte address 0x4 - core index']
  #allocation1 [shape = 'u32[72,128]{1,0:T(1,128)}', space=vmem, size = 0x9000, scoped, tag = 'internal scratch']
  #allocation2 [shape = 'f32[12,14]{1,0:T(8,128)}', space=vmem, size = 0x2000, scoped, tag = 'scratch operand']
  %s0 = inlined_call_operand.hbm [shape: f32[2,4,16], index: 0, kind: input, shape index: {}]
  %s1 = inlined_call_operand.hbm [shape: f32[8,12], index: 1, kind: input, shape index: {}]
  %s2 = inlined_call_operand.hbm [shape: f32[2,8,14], index: 2, kind: output, shape index: {}]
  %s3 = sld [smem:[#allocation0]]
  $region49: #{tpu_custom_call.1} parent=0
    _
  %s5 = ssub.s32 1, %s3
  %s6 = scalar_select 0, %s5, %s3
  $region1: #{tpu_custom_call.1} parent=0
    #allocation3 [shape = 'u8[4096]{0}', space=vmem, size = 0x1000, scoped, tag = 'input window, operand 0']
    #allocation4 [shape = 's32[2]{0}', space=sflag, size = 0x8, scoped, tag = 'scoped memory for tpu_custom_call.1']
    #allocation5 [shape = 's32[2]{0}', space=sflag, size = 0x8, scoped, tag = 'scoped memory for tpu_custom_call.1']
    #allocation6 [shape = 'u8[4096]{0}', space=vmem, size = 0x1000, scoped, tag = 'input window, operand 1, single buffered']
    #allocation7 [shape = 's32[1]{0}', space=sflag, size = 0x4, scoped, tag = 'scoped memory for tpu_custom_call.1']
    #allocation8 [shape = 'u8[8192]{0}', space=vmem, size = 0x2000, scoped, tag = 'output window, operand 0']
    %7 = vsyncpa [#allocation4], 0
    %s8 = scalar_lea.sflag [#allocation4], 1
    %9 = vsyncpa %s8, 0
    %10 = vsyncpa [#allocation7], 0
    %11 = vsyncpa [#allocation5], 0
    %s12 = scalar_lea.sflag [#allocation5], 1
    %13 = vsyncpa %s12, 0
    loop: start=0, step=1, limit=4
    $region2: #{tpu_custom_call.1} parent=1 // loop_pre_header
      _
    $region3: #{tpu_custom_call.1} parent=1 // loop_header
      %s15 = sphi 0, %s19
      %p16 = scmp.ge.s32.totalorder %s15, 4
      %s22 = sphi 0, %s34
      %s23 = sphi 0, %s30
      %s24 = sphi 0, %s22
      %s25 = sphi 0, %s23
      %s26 = sphi 0, %s24
      %s27 = sphi 0, %s25
      %s37 = sphi 0, %s39
      %s40 = sphi 0, %s37
      %s41 = sphi 0, %s40
      %s57 = sphi 0, %s41
      %s61 = sphi 0, %s61
      %s63 = sphi 0, %s61
      %s64 = sphi 0, %s63
      %s78 = sphi 0, %s64
      %s86 = sphi 0, %s88
      %s89 = sphi 0, %s86
      %s90 = sphi 0, %s89
      %s106 = sphi 0, %s90
    $region4: #{tpu_custom_call.1} parent=1 // loop_header_branch
      %18 = sbr.rel (%p16) target = $region8
    $region5: #{tpu_custom_call.1} parent=1 // loop_body
      %s20 = ssub.s32 %s15, 1
      %s21 = ssub.s32 %s15, 2
      %s28 = sadd.s32 1, %s23
      %p29 = scmp.ge.s32.totalorder %s28, 1
      %s30 = scalar_select %p29, 0, %s28
      %s31 = sadd.s32 1, %s22
      %s32 = scalar_select %p29, %s31, %s22
      %p33 = scmp.ge.s32.totalorder %s32, 2
      %s34 = scalar_select %p33, 0, %s32
      %s35 = ssub.s32 %s22, %s34
      %p36 = scmp.eq.s32.totalorder %s35, 0
      %s38 = sadd.s32 %s37, 1
      %s39 = scalar_select %p36, %s37, %s38
      %p42 = pneg %p36
      %p43 = scmp.eq.s32.totalorder %s15, 1
      %p44 = por %p42, %p43
      %p45 = scmp.ne.s32.totalorder %s37, %s40
      %p46 = scmp.eq.s32.totalorder %s15, 0
      %p47 = por %p45, %p46
      %p48 = scmp.ne.s32.totalorder %s37, %s40
      %p49 = scmp.eq.s32.totalorder %s20, 1
      %p50 = por %p48, %p49
      %p51 = scmp.ne.s32.totalorder %s40, %s41
      %p52 = scmp.eq.s32.totalorder %s20, 0
      %p53 = por %p51, %p52
      %p54 = scmp.ne.s32.totalorder %s40, %s41
      %p55 = scmp.eq.s32.totalorder %s21, 1
      %p56 = por %p54, %p55
      %p58 = scmp.ne.s32.totalorder %s41, %s57
      %p59 = scmp.eq.s32.totalorder %s21, 0
      %p60 = por %p58, %p59
      %s62 = sadd.s32 %s61, 1
      %p65 = scmp.eq.s32.totalorder %s15, 1
      %p66 = scmp.ne.s32.totalorder %s61, %s63
      %p67 = scmp.eq.s32.totalorder %s15, 0
      %p68 = por %p66, %p67
      %p69 = scmp.ne.s32.totalorder %s61, %s63
      %p70 = scmp.eq.s32.totalorder %s20, 1
      %p71 = por %p69, %p70
      %p72 = scmp.ne.s32.totalorder %s63, %s64
      %p73 = scmp.eq.s32.totalorder %s20, 0
      %p74 = por %p72, %p73
      %p75 = scmp.ne.s32.totalorder %s63, %s64
      %p76 = scmp.eq.s32.totalorder %s21, 1
      %p77 = por %p75, %p76
      %p79 = scmp.ne.s32.totalorder %s64, %s78
      %p80 = scmp.eq.s32.totalorder %s21, 0
      %p81 = por %p79, %p80
      %s82 = ssub.s32 %s22, %s34
      %s83 = ssub.s32 %s23, %s30
      %s84 = sor.u32 %s82, %s83
      %p85 = scmp.eq.s32.totalorder %s84, 0
      %s87 = sadd.s32 %s86, 1
      %s88 = scalar_select %p85, %s86, %s87
      %p91 = pneg %p85
      %p92 = scmp.eq.s32.totalorder %s15, 1
      %p93 = por %p91, %p92
      %p94 = scmp.ne.s32.totalorder %s86, %s89
      %p95 = scmp.eq.s32.totalorder %s15, 0
      %p96 = por %p94, %p95
      %p97 = scmp.ne.s32.totalorder %s86, %s89
      %p98 = scmp.eq.s32.totalorder %s20, 1
      %p99 = por %p97, %p98
      %p100 = scmp.ne.s32.totalorder %s89, %s90
      %p101 = scmp.eq.s32.totalorder %s20, 0
      %p102 = por %p100, %p101
      %p103 = scmp.ne.s32.totalorder %s89, %s90
      %p104 = scmp.eq.s32.totalorder %s21, 1
      %p105 = por %p103, %p104
      %p107 = scmp.ne.s32.totalorder %s90, %s106
      %p108 = scmp.eq.s32.totalorder %s21, 0
      %p109 = por %p107, %p108
      %p110 = scmp.le.s32.totalorder 1, %s15
      %p111 = scmp.lt.s32.totalorder %s15, 3
      %p112 = pnand %p110, %p111
      %p113 = pneg %p112
      // Predicated region
      $region9: #{tpu_custom_call.1} parent=5 // pred_check
        _
      $region10: #{tpu_custom_call.1} parent=5 // pred_check_branch
        %115 = sbr.rel (%p112) target = $region12
      $region11: #{tpu_custom_call.1} parent=5 // pred_region
        %s116 = ssub.s32 %s15, 1
        // Predicated region
        $region13: #{tpu_custom_call.1} parent=11 // pred_check
          %p117 = pneg %p74
        $region14: #{tpu_custom_call.1} parent=11 // pred_check_branch
          %119 = sbr.rel (%p117) target = $region16
        $region15: #{tpu_custom_call.1} parent=11 // pred_region
          %121 = vsyncadd [#allocation7], 0
          %s123 = sshll.u32 %s1, 4
          %s124 = int_to_ptr.hbm [resolvable:$true] %s123
          %s125 = sshll.u32 [#allocation6], 4
          %s126 = int_to_ptr.vmem [resolvable:$true] %s125
          %128 = dma.hbm_to_vmem [thread:$0]  %s124, 128, %s126, [#allocation7]
        $region16: #{tpu_custom_call.1} parent=11 // pred_fallthru
          _
      $region12: #{tpu_custom_call.1} parent=5 // pred_fallthru
        _
      %p129 = scmp.lt.s32.totalorder %s15, 2
      // Predicated region
      $region17: #{tpu_custom_call.1} parent=5 // pred_check
        %p130 = pneg %p129
      $region18: #{tpu_custom_call.1} parent=5 // pred_check_branch
        %132 = sbr.rel (%p130) target = $region20
      $region19: #{tpu_custom_call.1} parent=5 // pred_region
        // Predicated region
        $region21: #{tpu_custom_call.1} parent=19 // pred_check
          %p133 = pneg %p47
        $region22: #{tpu_custom_call.1} parent=19 // pred_check_branch
          %135 = sbr.rel (%p133) target = $region24
        $region23: #{tpu_custom_call.1} parent=19 // pred_region
          %s136 = sand.u32 %s37, 1
          %s137 = scalar_lea.sflag [#allocation4], %s136
          %s138 = sand.u32 %s37, 1
          %s139 = smul.addr %s138, 4
          %s140 = scalar_lea.vmem [#allocation3], %s139
          %142 = vsyncadd %s137, 0
          %s143 = smul.addr %s22, 4
          %s144 = scalar_lea.hbm %s0, %s143
          %s146 = sshll.u32 %s144, 4
          %s147 = int_to_ptr.hbm [resolvable:$true] %s146
          %s148 = sshll.u32 %s140, 4
          %s149 = int_to_ptr.vmem [resolvable:$true] %s148
          %151 = dma.hbm_to_vmem [thread:$0]  %s147, 64, %s149, %s137
        $region24: #{tpu_custom_call.1} parent=19 // pred_fallthru
          _
      $region20: #{tpu_custom_call.1} parent=5 // pred_fallthru
        _
      %p152 = scmp.le.s32.totalorder 1, %s15
      %p153 = scmp.lt.s32.totalorder %s15, 3
      %p154 = pnand %p152, %p153
      %p155 = pneg %p154
      // Predicated region
      $region25: #{tpu_custom_call.1} parent=5 // pred_check
        _
      $region26: #{tpu_custom_call.1} parent=5 // pred_check_branch
        %157 = sbr.rel (%p154) target = $region28
      $region27: #{tpu_custom_call.1} parent=5 // pred_region
        %s158 = ssub.s32 %s15, 1
        %s159 = sand.u32 %s40, 1
        %s160 = scalar_lea.sflag [#allocation4], %s159
        %s161 = sand.u32 %s40, 1
        %s162 = smul.addr %s161, 4
        %s163 = scalar_lea.vmem [#allocation3], %s162
        // Predicated region
        $region29: #{tpu_custom_call.1} parent=27 // pred_check
          %p164 = pneg %p53
        $region30: #{tpu_custom_call.1} parent=27 // pred_check_branch
          %166 = sbr.rel (%p164) target = $region32
        $region31: #{tpu_custom_call.1} parent=27 // pred_region
          %168 = dma.done %s160, 64
        $region32: #{tpu_custom_call.1} parent=27 // pred_fallthru
          _
        // Predicated region
        $region33: #{tpu_custom_call.1} parent=27 // pred_check
          %p169 = pneg %p74
        $region34: #{tpu_custom_call.1} parent=27 // pred_check_branch
          %171 = sbr.rel (%p169) target = $region36
        $region35: #{tpu_custom_call.1} parent=27 // pred_region
          %173 = dma.done [#allocation7], 128
        $region36: #{tpu_custom_call.1} parent=27 // pred_fallthru
          _
        %s174 = sand.u32 %s40, 1
        %s175 = scalar_lea.sflag [#allocation4], %s174
        %s176 = sand.u32 %s40, 1
        %s177 = smul.addr %s176, 4
        %s178 = scalar_lea.vmem [#allocation3], %s177
        %p179 = pneg %p53
        %p180 = pneg %p50
        %p181 = pneg %p74
        %p182 = pneg %p71
        %p183 = pneg %p102
        %p184 = pneg %p99
        %s185 = sand.u32 %s89, 1
        %s186 = scalar_lea.sflag [#allocation5], %s185
        %s187 = sand.u32 %s89, 1
        %s188 = smul.addr %s187, 8
        %s189 = scalar_lea.vmem [#allocation8], %s188
        %v190 = vld [vmem:[%s163] sm:$0xf]
        %vm191 = vcmask 109568
        %192 = vst.msk [vmem:[#allocation2] sm:$0xf] %vm191, %v190
        %v193 = vld [vmem:[%s163] sm:$0xf]
        %195 = vrot.lane.b32.xlu0 %v193, 127
        %v196 = vpop.permute.xlu0 %195
        %198 = vst.msk [vmem:[#allocation2 + $0x4] sm:$0xf] %vm191, %v196
        %v199 = vld [vmem:[%s163] sm:$0xf]
        %201 = vrot.lane.b32.xlu0 %v199, 126
        %v202 = vpop.permute.xlu0 %201
        %204 = vst.msk [vmem:[#allocation2 + $0x8] sm:$0xf] %vm191, %v202
        %v205 = vld [vmem:[#allocation6] sm:$0xff]
        %v206 = vld [vmem:[#allocation2] sm:$0xff]
        %v207 = vld [vmem:[#allocation2 + $0x8] sm:$0xf]
        %vm208 = vcmask 97280
        %v210 = vsel %vm208, %v205, 0
        %vm212 = vcmask 1043456
        %v214 = vsel %vm212, %v207, 0
        %216 = vmatpush.msra.mxu0 0.0
        %217 = vmatpush.msra.mxu0 0.0
        %218 = vmatpush.msra.mxu0 0.0
        %219 = vmatpush.msra.mxu0 0.0
        %220 = vmatpush.msra.mxu0 0.0
        %221 = vmatpush.msra.mxu0 0.0
        %222 = vmatpush.msra.mxu0 0.0
        %223 = vmatpush.msra.mxu0 0.0
        %224 = vmatpush.msra.mxu0 0.0
        %225 = vmatpush.msra.mxu0 0.0
        %226 = vmatpush.msra.mxu0 0.0
        %227 = vmatpush.msra.mxu0 0.0
        %228 = vmatpush.msra.mxu0 0.0
        %229 = vmatpush.msra.mxu0 0.0
        %230 = vmatpush.msra.mxu0 %v214
        %231 = vmatpush.msra.mxu0 %v206
        %232 = vmatmul.f32.gmra.mxu0 %v210
        %v233 = vpop.f32.mrf.mxu0
        %v234 = vadd.f32 0.0, %v233
        %235 = vdwg.mxu0
        %vm236 = vcmask 113664
        %237 = vst.msk [vmem:[%s189] sm:$0xff] %vm236, %v234
        %s238 = sand.u32 %s89, 1
        %s239 = scalar_lea.sflag [#allocation5], %s238
        %s240 = sand.u32 %s89, 1
        %s241 = smul.addr %s240, 8
        %s242 = scalar_lea.vmem [#allocation8], %s241
        // Predicated region
        $region37: #{tpu_custom_call.1} parent=27 // pred_check
          %p243 = pneg %p99
        $region38: #{tpu_custom_call.1} parent=27 // pred_check_branch
          %245 = sbr.rel (%p243) target = $region40
        $region39: #{tpu_custom_call.1} parent=27 // pred_region
          %247 = vsyncadd %s239, 0
          %s248 = sadd.s32 %s25, %s24
          %s249 = smul.addr %s248, 8
          %s250 = scalar_lea.hbm %s2, %s249
          %s252 = sshll.u32 %s242, 4
          %s253 = int_to_ptr.vmem [resolvable:$true] %s252
          %s254 = sshll.u32 %s250, 4
          %s255 = int_to_ptr.hbm [resolvable:$true] %s254
          %257 = dma.vmem_to_hbm [thread:$0]  %s253, 128, %s255, %s239
        $region40: #{tpu_custom_call.1} parent=27 // pred_fallthru
          _
      $region28: #{tpu_custom_call.1} parent=5 // pred_fallthru
        _
      %p258 = scmp.le.s32.totalorder 2, %s15
      // Predicated region
      $region41: #{tpu_custom_call.1} parent=5 // pred_check
        %p259 = pneg %p258
      $region42: #{tpu_custom_call.1} parent=5 // pred_check_branch
        %261 = sbr.rel (%p259) target = $region44
      $region43: #{tpu_custom_call.1} parent=5 // pred_region
        %s262 = ssub.s32 %s15, 2
        // Predicated region
        $region45: #{tpu_custom_call.1} parent=43 // pred_check
          %p263 = pneg %p105
        $region46: #{tpu_custom_call.1} parent=43 // pred_check_branch
          %265 = sbr.rel (%p263) target = $region48
        $region47: #{tpu_custom_call.1} parent=43 // pred_region
          %s266 = sand.u32 %s90, 1
          %s267 = scalar_lea.sflag [#allocation5], %s266
          %s268 = sand.u32 %s90, 1
          %s269 = smul.addr %s268, 8
          %s270 = scalar_lea.vmem [#allocation8], %s269
          %272 = dma.done %s267, 128
        $region48: #{tpu_custom_call.1} parent=43 // pred_fallthru
          _
      $region44: #{tpu_custom_call.1} parent=5 // pred_fallthru
        _
    $region6: #{tpu_custom_call.1} parent=1 // loop_footer
      %s19 = sadd.s32 1, %s15
    $region7: #{tpu_custom_call.1} parent=1 // loop_footer_branch
      %14 = sbr.rel target = $region3
    $region8: #{tpu_custom_call.1} parent=1 // loop_exit
      _
    %273 = vsyncpa [#allocation4], 1
    %s274 = scalar_lea.sflag [#allocation4], 1
    %275 = vsyncpa %s274, 1
    %276 = vsyncpa [#allocation7], 1
    %277 = vsyncpa [#allocation5], 1
    %s278 = scalar_lea.sflag [#allocation5], 1
    %279 = vsyncpa %s278, 1

</llo_original>
